<compile_context>
chip_gen: v5e
topology: v5e:2x2
jax: 0.10.0
libtpu: 0.0.40
codegen_flags: <defaults>
</compile_context>

<pallas_src>
import functools

import jax
import jax.numpy as jnp
from jax.experimental import pallas as pl
from jax.experimental.pallas import tpu as pltpu


_TARGET_BLOCK_BYTES = 8 * 1024 * 1024     # ~8 MiB per input/output block
_VMEM_LIMIT_BYTES = 48 * 1024 * 1024      # 2x in + 2x out blocks + gamma + slack
                                          # (kept < 64 MiB so it is v7x-safe)


def _sublane_multiple(dtype):
    itemsize = jnp.dtype(dtype).itemsize
    return {4: 8, 2: 16, 1: 32}.get(itemsize, 8)


def _choose_tile_rows(rows, d_model, dtype):
    """Pick the largest row tile that divides `rows`, is a multiple of the
    sublane packing for `dtype`, and keeps one block under the byte target.
    Returns (tile_rows, needs_pad)."""
    itemsize = jnp.dtype(dtype).itemsize
    sub = _sublane_multiple(dtype)
    row_bytes = max(d_model * itemsize, 1)
    max_rows = max(sub, _TARGET_BLOCK_BYTES // row_bytes)
    max_rows = max((max_rows // sub) * sub, sub)

    if rows <= max_rows:
        # Whole slab fits one block; block == full array dim is always legal.
        return rows, False

    # Largest multiple-of-`sub` divisor of `rows` not exceeding max_rows.
    t = (min(rows, max_rows) // sub) * sub
    while t >= sub:
        if rows % t == 0:
            return t, False
        t -= sub

    # No clean divisor: fall back to padding the trailing rows.
    return max_rows, True


def _rmsnorm_kernel(x_ref, g_ref, o_ref, *, epsilon):
    # x_ref: (tile_rows, d_model), g_ref: (1, d_model) -- gamma stays resident
    # in VMEM across all grid steps (constant index_map).
    x = x_ref[...]
    if x.dtype != jnp.float32:
        x = x.astype(jnp.float32)
    g = g_ref[...]
    if g.dtype != jnp.float32:
        g = g.astype(jnp.float32)
    ms = jnp.mean(x * x, axis=-1, keepdims=True)        # mean over d_model
    inv_rms = jax.lax.rsqrt(ms + epsilon)               # 1 / sqrt(mean + eps)
    o_ref[...] = (x * inv_rms * g).astype(o_ref.dtype)


def rmsnorm(a, g, *, epsilon=1e-5, tile_rows=None):
    """RMSNorm over the last axis: a / sqrt(mean(a^2, -1) + eps) * g."""
    orig_shape = a.shape
    d_model = orig_shape[-1]
    rows = 1
    for s in orig_shape[:-1]:
        rows *= s
    x2d = a.reshape(rows, d_model)
    g2d = g.reshape(1, d_model)

    if tile_rows is None:
        tile_rows, needs_pad = _choose_tile_rows(rows, d_model, a.dtype)
    else:
        needs_pad = (rows % tile_rows) != 0

    if needs_pad:
        # TODO(synk): ragged row counts fall back to an extra HBM pad/slice
        # pass; common shapes (rows = batch*seq, power-of-two-ish) never hit
        # this path with the auto tile selection above.
        n_tiles = pl.cdiv(rows, tile_rows)
        padded_rows = n_tiles * tile_rows
        x2d = jnp.pad(x2d, ((0, padded_rows - rows), (0, 0)))
    else:
        n_tiles = rows // tile_rows
        padded_rows = rows

    # TODO(synk): for extremely large d_model (a single (sublane, d_model) f32
    # block > the VMEM budget) a second 'arbitrary' grid axis over d_model with
    # a sum-of-squares scratch accumulator would be needed; not implemented.

    kernel = functools.partial(_rmsnorm_kernel, epsilon=epsilon)
    out2d = pl.pallas_call(
        kernel,
        out_shape=jax.ShapeDtypeStruct((padded_rows, d_model), a.dtype),
        grid_spec=pltpu.PrefetchScalarGridSpec(
            num_scalar_prefetch=0,
            grid=(n_tiles,),
            in_specs=[
                pl.BlockSpec((tile_rows, d_model), lambda i: (i, 0)),
                pl.BlockSpec((1, d_model), lambda i: (0, 0)),
            ],
            out_specs=pl.BlockSpec((tile_rows, d_model), lambda i: (i, 0)),
        ),
        compiler_params=pltpu.CompilerParams(
            dimension_semantics=("parallel",),   # shards row tiles across TCs on v7x
            vmem_limit_bytes=_VMEM_LIMIT_BYTES,
        ),
    )(x2d, g2d)

    if padded_rows != rows:
        out2d = out2d[:rows]
    return out2d.reshape(orig_shape)


if __name__ == "__main__":
    batch, seq, d_model = 2, 8, 32
    epsilon = 1e-5

    key = jax.random.PRNGKey(0)
    k_a, k_g = jax.random.split(key)
    a = jax.random.normal(k_a, (batch, seq, d_model), dtype=jnp.float32)
    # nn.Parameter(torch.rand(d_model)) -> uniform [0, 1)
    g = jax.random.uniform(k_g, (d_model,), dtype=jnp.float32)

    out = rmsnorm(a, g, epsilon=epsilon)
    jax.block_until_ready(out)

    # Reference check in plain JAX (same semantics as the PyTorch module).
    rms = jnp.sqrt(jnp.mean(a ** 2, axis=-1, keepdims=True) + epsilon)
    ref = a / rms * g
    assert out.shape == a.shape
    assert jnp.allclose(out, ref, atol=1e-5, rtol=1e-5)

    print("KERNEL_OK")
</pallas_src>

<mosaic_0001>
module attributes {stable_mosaic.version = 11 : i64} {
  func.func @_rmsnorm_kernel(%arg0: i32, %arg1: memref<16x32xf32, #tpu.memory_space<vmem>>, %arg2: memref<1x32xf32, #tpu.memory_space<vmem>>, %arg3: memref<16x32xf32, #tpu.memory_space<vmem>>) attributes {dimension_semantics = [#tpu.dimension_semantics<parallel>], iteration_bounds = array<i64: 1>, scalar_prefetch = 0 : i64, scratch_operands = 0 : i64, tpu.core_type = #tpu.core_type<tc>, window_params = [{transform_indices = @transform_0, window_bounds = array<i64: 16, 32>}, {pipeline_mode = #tpu.pipeline_mode<synchronous>, transform_indices = @transform_1, window_bounds = array<i64: 1, 32>}, {transform_indices = @transform_2, window_bounds = array<i64: 16, 32>}]} {
    %c0 = arith.constant 0 : index
    %c0_0 = arith.constant 0 : index
    %0 = vector.load %arg1[%c0, %c0_0] : memref<16x32xf32, #tpu.memory_space<vmem>>, vector<16x32xf32>
    %c0_1 = arith.constant 0 : index
    %c0_2 = arith.constant 0 : index
    %1 = vector.load %arg2[%c0_1, %c0_2] : memref<1x32xf32, #tpu.memory_space<vmem>>, vector<1x32xf32>
    %2 = arith.mulf %0, %0 : vector<16x32xf32>
    %cst = arith.constant dense<0.000000e+00> : vector<16xf32>
    %3 = vector.multi_reduction <add>, %2, %cst [1] : vector<16x32xf32> to vector<16xf32>
    %4 = vector.shape_cast %3 : vector<16xf32> to vector<16x1xf32>
    %cst_3 = arith.constant 3.200000e+01 : f32
    %5 = vector.broadcast %cst_3 : f32 to vector<16x1xf32>
    %6 = arith.divf %4, %5 : vector<16x1xf32>
    %cst_4 = arith.constant 9.99999974E-6 : f32
    %7 = vector.broadcast %cst_4 : f32 to vector<16x1xf32>
    %8 = arith.addf %6, %7 : vector<16x1xf32>
    %9 = math.rsqrt %8 : vector<16x1xf32>
    %10 = vector.broadcast %9 : vector<16x1xf32> to vector<16x32xf32>
    %11 = arith.mulf %0, %10 : vector<16x32xf32>
    %12 = vector.broadcast %1 : vector<1x32xf32> to vector<16x32xf32>
    %13 = arith.mulf %11, %12 : vector<16x32xf32>
    %c0_5 = arith.constant 0 : index
    %c0_6 = arith.constant 0 : index
    %14 = vector.load %arg3[%c0_5, %c0_6] : memref<16x32xf32, #tpu.memory_space<vmem>>, vector<16x32xf32>
    tpu.vector_store %arg3[%c0_5, %c0_6], %13 {strides = array<i32>} : memref<16x32xf32, #tpu.memory_space<vmem>>, vector<16x32xf32>,
    return
  }
  func.func @transform_0(%arg0: i32) -> (i32, i32) {
    %c0_i32 = arith.constant 0 : i32
    %c0_i32_0 = arith.constant 0 : i32
    return %arg0, %c0_i32 : i32, i32
  }
  func.func @transform_1(%arg0: i32) -> (i32, i32) {
    %c0_i32 = arith.constant 0 : i32
    %c0_i32_0 = arith.constant 0 : i32
    %c0_i32_1 = arith.constant 0 : i32
    return %c0_i32, %c0_i32_0 : i32, i32
  }
  func.func @transform_2(%arg0: i32) -> (i32, i32) {
    %c0_i32 = arith.constant 0 : i32
    %c0_i32_0 = arith.constant 0 : i32
    return %arg0, %c0_i32 : i32, i32
  }
}

</mosaic_0001>

<llo_original>
// kernel: tpu_custom_call.1
$region0: #{tpu_custom_call.1}
  #allocation0 [shape = 'u32[]', space=smem, size = 0x4, offset = 0x4, fixed_abs, tag = 'smem constant byte address 0x4 - core index']
  #allocation1 [shape = 'u32[72,128]{1,0:T(1,128)}', space=vmem, size = 0x9000, scoped, tag = 'internal scratch']
  %s0 = inlined_call_operand.hbm [shape: f32[16,32], index: 0, kind: input, shape index: {}]
  %s1 = inlined_call_operand.hbm [shape: f32[1,32], index: 1, kind: input, shape index: {}]
  %s2 = inlined_call_operand.hbm [shape: f32[16,32], index: 2, kind: output, shape index: {}]
  %s3 = sld [smem:[#allocation0]]
  $region26: #{tpu_custom_call.1} parent=0
    _
  %s5 = ssub.s32 1, %s3
  %s6 = scalar_select 0, %s5, %s3
  $region1: #{tpu_custom_call.1} parent=0
    #allocation2 [shape = 'u8[8192]{0}', space=vmem, size = 0x2000, scoped, tag = 'input window, operand 0, single buffered']
    #allocation3 [shape = 's32[1]{0}', space=sflag, size = 0x4, scoped, tag = 'scoped memory for tpu_custom_call.1']
    #allocation4 [shape = 's32[1]{0}', space=sflag, size = 0x4, scoped, tag = 'scoped memory for tpu_custom_call.1']
    #allocation5 [shape = 'u8[512]{0}', space=vmem, size = 0x400, scoped, tag = 'input window, operand 1, single buffered']
    #allocation6 [shape = 's32[1]{0}', space=sflag, size = 0x4, scoped, tag = 'scoped memory for tpu_custom_call.1']
    #allocation7 [shape = 'u8[8192]{0}', space=vmem, size = 0x2000, scoped, tag = 'output window, operand 0, single buffered']
    %7 = vsyncpa [#allocation3], 0
    %8 = vsyncpa [#allocation6], 0
    %9 = vsyncpa [#allocation4], 0
    // Predicated region
    $region2: #{tpu_custom_call.1} parent=1 // pred_check
      _
    $region3: #{tpu_custom_call.1} parent=1 // pred_check_branch
      %11 = sbr.rel (0) target = $region5
    $region4: #{tpu_custom_call.1} parent=1 // pred_region
      %13 = vsyncadd [#allocation3], 0
      %s14 = sshll.u32 %s0, 4
      %s15 = int_to_ptr.hbm [resolvable:$true] %s14
      %s16 = sshll.u32 [#allocation2], 4
      %s17 = int_to_ptr.vmem [resolvable:$true] %s16
      %22 = dma.hbm_to_vmem [thread:$0]  %s15, 256, %s17, [#allocation3], 128, 128, 8
    $region5: #{tpu_custom_call.1} parent=1 // pred_fallthru
      _
    // Predicated region
    $region6: #{tpu_custom_call.1} parent=1 // pred_check
      _
    $region7: #{tpu_custom_call.1} parent=1 // pred_check_branch
      %24 = sbr.rel (0) target = $region9
    $region8: #{tpu_custom_call.1} parent=1 // pred_region
      %26 = vsyncadd [#allocation6], 0
      %s28 = sshll.u32 %s1, 4
      %s29 = int_to_ptr.hbm [resolvable:$true] %s28
      %s30 = sshll.u32 [#allocation5], 4
      %s31 = int_to_ptr.vmem [resolvable:$true] %s30
      %33 = dma.hbm_to_vmem [thread:$0]  %s29, 16, %s31, [#allocation6]
    $region9: #{tpu_custom_call.1} parent=1 // pred_fallthru
      _
    // Predicated region
    $region10: #{tpu_custom_call.1} parent=1 // pred_check
      _
    $region11: #{tpu_custom_call.1} parent=1 // pred_check_branch
      %35 = sbr.rel (0) target = $region13
    $region12: #{tpu_custom_call.1} parent=1 // pred_region
      %37 = dma.done [#allocation3], 256
    $region13: #{tpu_custom_call.1} parent=1 // pred_fallthru
      _
    // Predicated region
    $region14: #{tpu_custom_call.1} parent=1 // pred_check
      _
    $region15: #{tpu_custom_call.1} parent=1 // pred_check_branch
      %39 = sbr.rel (0) target = $region17
    $region16: #{tpu_custom_call.1} parent=1 // pred_region
      %41 = dma.done [#allocation6], 16
    $region17: #{tpu_custom_call.1} parent=1 // pred_fallthru
      _
    %v42 = vld [vmem:[#allocation2] sm:$0xff]
    %v43 = vld [vmem:[#allocation2 + $0x8] sm:$0xff]
    %v44 = vld [vmem:[#allocation5] sm:$0x1]
    %v45 = vmul.f32 %v42, %v42
    %v46 = vmul.f32 %v43, %v43
    %vm47 = vcmask 261120
    %v48 = vsel %vm47, %v45, 0.0
    %49 = vadd.xlane.f32.xlu0 %v48
    %v50 = vpop.xlane.xlu0 %49
    %v51 = vsel %vm47, %v46, 0.0
    %52 = vadd.xlane.f32.xlu0 %v51
    %v53 = vpop.xlane.xlu0 %52
    %v54 = vrcp.pop 32.0
    %v55 = vmul.f32 32.0, %v54
    %v56 = vsub.f32 1.0, %v55
    %v57 = vmul.f32 %v54, %v56
    %v58 = vadd.f32 %v54, %v57
    %vm59 = vweird.f32 %v54
    %v60 = vsel %vm59, %v54, %v58
    %v61 = vmul.f32 %v50, %v60
    %v62 = vmul.f32 %v53, %v60
    %v63 = vadd.f32 %v61, 1e-05
    %v64 = vadd.f32 %v62, 1e-05
    %v65 = vrsqrt.pop %v63
    %v66 = vmul.f32 %v65, %v63
    %v67 = vmul.f32 %v66, %v65
    %v68 = vmul.f32 0.5, %v67
    %v69 = vsub.f32 1.5, %v68
    %v70 = vmul.f32 %v65, %v69
    %vm71 = vweird.f32 %v63
    %vm72 = vweird.f32 %v65
    %vm73 = vmor %vm71, %vm72
    %v74 = vsel %vm73, %v65, %v70
    %v75 = vrsqrt.pop %v64
    %v76 = vmul.f32 %v75, %v64
    %v77 = vmul.f32 %v76, %v75
    %v78 = vmul.f32 0.5, %v77
    %v79 = vsub.f32 1.5, %v78
    %v80 = vmul.f32 %v75, %v79
    %vm81 = vweird.f32 %v64
    %vm82 = vweird.f32 %v75
    %vm83 = vmor %vm81, %vm82
    %v84 = vsel %vm83, %v75, %v80
    %v85 = vmul.f32 %v42, %v74
    %v86 = vmul.f32 %v43, %v84
    %v88 = vperm.slane %v44, 0
    %v90 = vmul.f32 %v85, %v88
    %v91 = vmul.f32 %v86, %v88
    %92 = vst.msk [vmem:[#allocation7] sm:$0xff] %vm47, %v90
    %93 = vst.msk [vmem:[#allocation7 + $0x8] sm:$0xff] %vm47, %v91
    // Predicated region
    $region18: #{tpu_custom_call.1} parent=1 // pred_check
      _
    $region19: #{tpu_custom_call.1} parent=1 // pred_check_branch
      %95 = sbr.rel (0) target = $region21
    $region20: #{tpu_custom_call.1} parent=1 // pred_region
      %97 = vsyncadd [#allocation4], 0
      %s98 = sshll.u32 [#allocation7], 4
      %s99 = int_to_ptr.vmem [resolvable:$true] %s98
      %s100 = sshll.u32 %s2, 4
      %s101 = int_to_ptr.hbm [resolvable:$true] %s100
      %106 = dma.vmem_to_hbm [thread:$0]  %s99, 256, %s101, [#allocation4], 128, 128, 8
    $region21: #{tpu_custom_call.1} parent=1 // pred_fallthru
      _
    // Predicated region
    $region22: #{tpu_custom_call.1} parent=1 // pred_check
      _
    $region23: #{tpu_custom_call.1} parent=1 // pred_check_branch
      %108 = sbr.rel (0) target = $region25
    $region24: #{tpu_custom_call.1} parent=1 // pred_region
      %110 = dma.done [#allocation4], 256
    $region25: #{tpu_custom_call.1} parent=1 // pred_fallthru
      _
    %111 = vsyncpa [#allocation3], 1
    %112 = vsyncpa [#allocation6], 1
    %113 = vsyncpa [#allocation4], 1

</llo_original>
